<compile_context>
chip_gen: v7x
topology: tpu7x:2x2x1
jax: 0.10.0
libtpu: 0.0.40
codegen_flags: <defaults>
</compile_context>

<pallas_src>
import functools

import jax
import jax.numpy as jnp
from jax.experimental import pallas as pl
from jax.experimental.pallas import tpu as pltpu

LANE = 128      # vreg lane width
SUBLANE = 8     # vreg sublane count (f32)
MTILE = 256     # M granularity for large batches (v6e/v7x MXU = 2x256x256)


def _round_up(v, m):
    return (v + m - 1) // m * m


def mlp_kernel(x_ref, w1_ref, b1_ref, w2_ref, b2_ref, wo_ref, bo_ref, o_ref):
    """Fused 2-hidden-layer MLP forward on one (TM, K) batch tile.

    x arrives f32 and is cast to bf16 in-kernel; weights are bf16;
    accumulation, bias add and ReLU are f32. Dropout = identity (eval mode).
    """
    x = x_ref[...].astype(jnp.bfloat16)  # (TM, K) f32 -> bf16 (VPU filler)

    # fc1 + relu1 (+ drop1 == identity at inference)
    h = jnp.dot(x, w1_ref[...], preferred_element_type=jnp.float32) + b1_ref[...]
    h = jnp.maximum(h, 0.0)

    # fc2 + relu2 (+ drop2 == identity at inference)
    h = jnp.dot(h.astype(jnp.bfloat16), w2_ref[...],
                preferred_element_type=jnp.float32) + b2_ref[...]
    h = jnp.maximum(h, 0.0)

    # out (stored bf16, lane-dense)
    o_ref[...] = (
        jnp.dot(h.astype(jnp.bfloat16), wo_ref[...],
                preferred_element_type=jnp.float32) + bo_ref[...]
    ).astype(o_ref.dtype)


def prepare_params(params):
    """One-time pad/cast of weights (hoisted out of the per-call forward).

    Weights -> bf16, output dims zero-padded to multiples of 128 (lane-dense);
    w1's input dim (K) is left unpadded (x keeps its natural last dim).
    Biases -> f32, padded to the same output widths.
    """
    k, h1 = params["w1"].shape
    h2 = params["w2"].shape[1]
    c = params["wo"].shape[1]
    h1p, h2p, cp = _round_up(h1, LANE), _round_up(h2, LANE), _round_up(c, LANE)

    prepared = {
        "w1": jnp.zeros((k, h1p), jnp.bfloat16).at[:, :h1].set(
            params["w1"].astype(jnp.bfloat16)),
        "w2": jnp.zeros((h1p, h2p), jnp.bfloat16).at[:h1, :h2].set(
            params["w2"].astype(jnp.bfloat16)),
        "wo": jnp.zeros((h2p, cp), jnp.bfloat16).at[:h2, :c].set(
            params["wo"].astype(jnp.bfloat16)),
        "b1": jnp.zeros((1, h1p), jnp.float32).at[:, :h1].set(params["b1"]),
        "b2": jnp.zeros((1, h2p), jnp.float32).at[:, :h2].set(params["b2"]),
        "bo": jnp.zeros((1, cp), jnp.float32).at[:, :c].set(params["bo"]),
    }
    return prepared


@functools.partial(jax.jit, static_argnames=("n_classes", "tm_max"))
def mlp_forward(x, prepared, *, n_classes, tm_max=512):
    """x: (N, C, H, W) float32. prepared: output of prepare_params()."""
    n = x.shape[0]
    x2d = x.reshape(n, -1)  # PyTorch x.view(x.size(0), -1), row-major
    k = x2d.shape[1]
    assert k == prepared["w1"].shape[0]

    h1p = prepared["w1"].shape[1]
    h2p = prepared["w2"].shape[1]
    cp = prepared["wo"].shape[1]

    # ---- M-tile / grid selection ------------------------------------------
    # Small batches: one sublane-aligned, full-extent tile.
    # Large batches: tm is a multiple of 256 (MXU M occupancy on v6e/v7x) and
    # chosen so the grid has >= 2 steps (keeps both v7x TensorCores busy),
    # capped at tm_max.
    tm_max = _round_up(tm_max, MTILE)
    n_pad8 = _round_up(n, SUBLANE)
    if n_pad8 <= MTILE:
        tm = n_pad8
        n_pad = n_pad8
    else:
        tm = min(tm_max, _round_up(-(-n_pad8 // 2), MTILE))
        n_pad = _round_up(n, tm)
    grid = (n_pad // tm,)

    # Batch-only zero pad of x (stays f32, last dim unpadded / full extent).
    if n_pad != n:
        xp = jnp.zeros((n_pad, k), x2d.dtype).at[:n].set(x2d)
    else:
        xp = x2d

    # x / out tiles follow the batch grid; weights & biases are VMEM-resident
    # (same block every grid step -> no re-DMA).
    # TODO(synk): if a profile shows exposed x DMA, try pipeline_mode=pl.Buffered(3).
    x_spec = pl.BlockSpec((tm, k), lambda i: (i, 0))
    w1_spec = pl.BlockSpec((k, h1p), lambda i: (0, 0))
    b1_spec = pl.BlockSpec((1, h1p), lambda i: (0, 0))
    w2_spec = pl.BlockSpec((h1p, h2p), lambda i: (0, 0))
    b2_spec = pl.BlockSpec((1, h2p), lambda i: (0, 0))
    wo_spec = pl.BlockSpec((h2p, cp), lambda i: (0, 0))
    bo_spec = pl.BlockSpec((1, cp), lambda i: (0, 0))
    o_spec = pl.BlockSpec((tm, cp), lambda i: (i, 0))

    out_padded = pl.pallas_call(
        mlp_kernel,
        out_shape=jax.ShapeDtypeStruct((n_pad, cp), jnp.bfloat16),
        grid=grid,
        in_specs=[x_spec, w1_spec, b1_spec, w2_spec, b2_spec, wo_spec, bo_spec],
        out_specs=o_spec,
        compiler_params=pltpu.CompilerParams(
            dimension_semantics=("parallel",)),
    )(xp, prepared["w1"], prepared["b1"], prepared["w2"], prepared["b2"],
      prepared["wo"], prepared["bo"])

    # Slice off padded rows / lanes, return f32 logits (tiny post-op).
    return out_padded[:n, :n_classes].astype(jnp.float32)


def init_params(key, input_dims, n_hiddens, n_classes):
    """Deterministic PyTorch-style init. Weights (in, out); biases (1, out)."""
    dims = [input_dims] + list(n_hiddens) + [n_classes]
    names = ["1", "2", "o"]
    params = {}
    keys = jax.random.split(key, len(names) * 2)
    for i, name in enumerate(names):
        fan_in, fan_out = dims[i], dims[i + 1]
        bound = 1.0 / jnp.sqrt(fan_in)
        params[f"w{name}"] = jax.random.uniform(
            keys[2 * i], (fan_in, fan_out), jnp.float32, -bound, bound)
        params[f"b{name}"] = jax.random.uniform(
            keys[2 * i + 1], (1, fan_out), jnp.float32, -bound, bound)
    return params


def mlp_reference_bf16(x, params):
    """Plain-JAX reference matching the kernel's bf16/f32 mixed precision."""
    h = x.reshape(x.shape[0], -1).astype(jnp.bfloat16)
    h = jnp.maximum(
        jnp.dot(h, params["w1"].astype(jnp.bfloat16),
                preferred_element_type=jnp.float32) + params["b1"], 0.0)
    h = jnp.maximum(
        jnp.dot(h.astype(jnp.bfloat16), params["w2"].astype(jnp.bfloat16),
                preferred_element_type=jnp.float32) + params["b2"], 0.0)
    out = jnp.dot(h.astype(jnp.bfloat16), params["wo"].astype(jnp.bfloat16),
                  preferred_element_type=jnp.float32) + params["bo"]
    # Kernel stores bf16, wrapper casts back to f32.
    return out.astype(jnp.bfloat16).astype(jnp.float32)


def mlp_reference_f32(x, params):
    """Full-precision reference (loose check only)."""
    h = x.reshape(x.shape[0], -1)
    h = jnp.maximum(h @ params["w1"] + params["b1"], 0.0)
    h = jnp.maximum(h @ params["w2"] + params["b2"], 0.0)
    return h @ params["wo"] + params["bo"]


if __name__ == "__main__":
    # Small shapes: batch=2, channels=4, spatial=4x4 -> input_dims=64
    batch, C, H, W = 2, 4, 4, 4
    input_dims = C * H * W          # 64
    n_hiddens = [32, 32]
    n_classes = 10

    key = jax.random.PRNGKey(0)
    kx, kp = jax.random.split(key)
    x = jax.random.normal(kx, (batch, C, H, W), dtype=jnp.float32)
    params = init_params(kp, input_dims, n_hiddens, n_classes)

    prepared = prepare_params(params)           # one-time pad/cast
    out = mlp_forward(x, prepared, n_classes=n_classes)
    out = jax.block_until_ready(out)
    assert out.shape == (batch, n_classes)

    ref_bf16 = mlp_reference_bf16(x, params)
    ref_f32 = mlp_reference_f32(x, params)
    assert jnp.allclose(out, ref_bf16, atol=2e-3, rtol=2e-3), \
        "mismatch vs bf16-matched reference"
    assert jnp.allclose(out, ref_f32, atol=3e-2, rtol=3e-2), \
        "mismatch vs f32 reference"

    print("KERNEL_OK")
</pallas_src>

<mosaic_0001>
module attributes {stable_mosaic.version = 11 : i64} {
  func.func @mlp_kernel(%arg0: i32, %arg1: memref<8x64xf32, #tpu.memory_space<vmem>>, %arg2: memref<64x128xbf16, #tpu.memory_space<vmem>>, %arg3: memref<1x128xf32, #tpu.memory_space<vmem>>, %arg4: memref<128x128xbf16, #tpu.memory_space<vmem>>, %arg5: memref<1x128xf32, #tpu.memory_space<vmem>>, %arg6: memref<128x128xbf16, #tpu.memory_space<vmem>>, %arg7: memref<1x128xf32, #tpu.memory_space<vmem>>, %arg8: memref<8x128xbf16, #tpu.memory_space<vmem>>) attributes {dimension_semantics = [#tpu.dimension_semantics<parallel>], iteration_bounds = array<i64: 1>, scalar_prefetch = 0 : i64, scratch_operands = 0 : i64, tpu.core_type = #tpu.core_type<tc>, window_params = [{transform_indices = @transform_0, window_bounds = array<i64: 8, 64>}, {pipeline_mode = #tpu.pipeline_mode<synchronous>, transform_indices = @transform_1, window_bounds = array<i64: 64, 128>}, {pipeline_mode = #tpu.pipeline_mode<synchronous>, transform_indices = @transform_2, window_bounds = array<i64: 1, 128>}, {pipeline_mode = #tpu.pipeline_mode<synchronous>, transform_indices = @transform_3, window_bounds = array<i64: 128, 128>}, {pipeline_mode = #tpu.pipeline_mode<synchronous>, transform_indices = @transform_4, window_bounds = array<i64: 1, 128>}, {pipeline_mode = #tpu.pipeline_mode<synchronous>, transform_indices = @transform_5, window_bounds = array<i64: 128, 128>}, {pipeline_mode = #tpu.pipeline_mode<synchronous>, transform_indices = @transform_6, window_bounds = array<i64: 1, 128>}, {transform_indices = @transform_7, window_bounds = array<i64: 8, 128>}]} {
    %c0 = arith.constant 0 : index
    %c0_0 = arith.constant 0 : index
    %0 = vector.load %arg1[%c0, %c0_0] : memref<8x64xf32, #tpu.memory_space<vmem>>, vector<8x64xf32>
    %1 = arith.truncf %0 : vector<8x64xf32> to vector<8x64xbf16>
    %c0_1 = arith.constant 0 : index
    %c0_2 = arith.constant 0 : index
    %2 = vector.load %arg2[%c0_1, %c0_2] : memref<64x128xbf16, #tpu.memory_space<vmem>>, vector<64x128xbf16>
    %cst = arith.constant dense<0.000000e+00> : vector<8x128xf32>
    %3 = tpu.matmul %1, %2, %cst {dimension_numbers = #tpu.dot_dimension_numbers<[1], [0], [0], [1], [0, 0, 1, 1], [], []>} : vector<8x64xbf16>, vector<64x128xbf16>, vector<8x128xf32> -> vector<8x128xf32>
    %c0_3 = arith.constant 0 : index
    %c0_4 = arith.constant 0 : index
    %4 = vector.load %arg3[%c0_3, %c0_4] : memref<1x128xf32, #tpu.memory_space<vmem>>, vector<1x128xf32>
    %5 = vector.broadcast %4 : vector<1x128xf32> to vector<8x128xf32>
    %6 = arith.addf %3, %5 : vector<8x128xf32>
    %cst_5 = arith.constant 0.000000e+00 : f32
    %7 = vector.broadcast %cst_5 : f32 to vector<8x128xf32>
    %8 = arith.maximumf %6, %7 : vector<8x128xf32>
    %9 = arith.truncf %8 : vector<8x128xf32> to vector<8x128xbf16>
    %c0_6 = arith.constant 0 : index
    %c0_7 = arith.constant 0 : index
    %10 = vector.load %arg4[%c0_6, %c0_7] : memref<128x128xbf16, #tpu.memory_space<vmem>>, vector<128x128xbf16>
    %cst_8 = arith.constant dense<0.000000e+00> : vector<8x128xf32>
    %11 = tpu.matmul %9, %10, %cst_8 {dimension_numbers = #tpu.dot_dimension_numbers<[1], [0], [0], [1], [0, 0, 1, 1], [], []>} : vector<8x128xbf16>, vector<128x128xbf16>, vector<8x128xf32> -> vector<8x128xf32>
    %c0_9 = arith.constant 0 : index
    %c0_10 = arith.constant 0 : index
    %12 = vector.load %arg5[%c0_9, %c0_10] : memref<1x128xf32, #tpu.memory_space<vmem>>, vector<1x128xf32>
    %13 = vector.broadcast %12 : vector<1x128xf32> to vector<8x128xf32>
    %14 = arith.addf %11, %13 : vector<8x128xf32>
    %cst_11 = arith.constant 0.000000e+00 : f32
    %15 = vector.broadcast %cst_11 : f32 to vector<8x128xf32>
    %16 = arith.maximumf %14, %15 : vector<8x128xf32>
    %17 = arith.truncf %16 : vector<8x128xf32> to vector<8x128xbf16>
    %c0_12 = arith.constant 0 : index
    %c0_13 = arith.constant 0 : index
    %18 = vector.load %arg6[%c0_12, %c0_13] : memref<128x128xbf16, #tpu.memory_space<vmem>>, vector<128x128xbf16>
    %cst_14 = arith.constant dense<0.000000e+00> : vector<8x128xf32>
    %19 = tpu.matmul %17, %18, %cst_14 {dimension_numbers = #tpu.dot_dimension_numbers<[1], [0], [0], [1], [0, 0, 1, 1], [], []>} : vector<8x128xbf16>, vector<128x128xbf16>, vector<8x128xf32> -> vector<8x128xf32>
    %c0_15 = arith.constant 0 : index
    %c0_16 = arith.constant 0 : index
    %20 = vector.load %arg7[%c0_15, %c0_16] : memref<1x128xf32, #tpu.memory_space<vmem>>, vector<1x128xf32>
    %21 = vector.broadcast %20 : vector<1x128xf32> to vector<8x128xf32>
    %22 = arith.addf %19, %21 : vector<8x128xf32>
    %23 = arith.truncf %22 : vector<8x128xf32> to vector<8x128xbf16>
    %c0_17 = arith.constant 0 : index
    %c0_18 = arith.constant 0 : index
    %24 = vector.load %arg8[%c0_17, %c0_18] : memref<8x128xbf16, #tpu.memory_space<vmem>>, vector<8x128xbf16>
    tpu.vector_store %arg8[%c0_17, %c0_18], %23 {strides = array<i32>} : memref<8x128xbf16, #tpu.memory_space<vmem>>, vector<8x128xbf16>,
    return
  }
  func.func @transform_0(%arg0: i32) -> (i32, i32) {
    %c0_i32 = arith.constant 0 : i32
    %c0_i32_0 = arith.constant 0 : i32
    return %arg0, %c0_i32 : i32, i32
  }
  func.func @transform_1(%arg0: i32) -> (i32, i32) {
    %c0_i32 = arith.constant 0 : i32
    %c0_i32_0 = arith.constant 0 : i32
    %c0_i32_1 = arith.constant 0 : i32
    return %c0_i32, %c0_i32_0 : i32, i32
  }
  func.func @transform_2(%arg0: i32) -> (i32, i32) {
    %c0_i32 = arith.constant 0 : i32
    %c0_i32_0 = arith.constant 0 : i32
    %c0_i32_1 = arith.constant 0 : i32
    return %c0_i32, %c0_i32_0 : i32, i32
  }
  func.func @transform_3(%arg0: i32) -> (i32, i32) {
    %c0_i32 = arith.constant 0 : i32
    %c0_i32_0 = arith.constant 0 : i32
    %c0_i32_1 = arith.constant 0 : i32
    return %c0_i32, %c0_i32_0 : i32, i32
  }
  func.func @transform_4(%arg0: i32) -> (i32, i32) {
    %c0_i32 = arith.constant 0 : i32
    %c0_i32_0 = arith.constant 0 : i32
    %c0_i32_1 = arith.constant 0 : i32
    return %c0_i32, %c0_i32_0 : i32, i32
  }
  func.func @transform_5(%arg0: i32) -> (i32, i32) {
    %c0_i32 = arith.constant 0 : i32
    %c0_i32_0 = arith.constant 0 : i32
    %c0_i32_1 = arith.constant 0 : i32
    return %c0_i32, %c0_i32_0 : i32, i32
  }
  func.func @transform_6(%arg0: i32) -> (i32, i32) {
    %c0_i32 = arith.constant 0 : i32
    %c0_i32_0 = arith.constant 0 : i32
    %c0_i32_1 = arith.constant 0 : i32
    return %c0_i32, %c0_i32_0 : i32, i32
  }
  func.func @transform_7(%arg0: i32) -> (i32, i32) {
    %c0_i32 = arith.constant 0 : i32
    %c0_i32_0 = arith.constant 0 : i32
    return %arg0, %c0_i32 : i32, i32
  }
}

</mosaic_0001>

<llo_original>
// kernel: mlp_forward.1
$region0: #{mlp_forward.1}
  #allocation0 [shape = 'u32[]', space=smem, size = 0x4, offset = 0x4, fixed_abs, tag = 'smem constant byte address 0x4 - core index']
  #allocation1 [shape = 'u32[144,128]{1,0:T(1,128)}', space=vmem, size = 0x12000, scoped, tag = 'internal scratch']
  %s0 = inlined_call_operand.vmem [shape: f32[8,64], index: 0, kind: input, shape index: {}]
  %s1 = inlined_call_operand.hbm [shape: bf16[64,128], index: 1, kind: input, shape index: {}]
  %s2 = inlined_call_operand.vmem [shape: f32[1,128], index: 2, kind: input, shape index: {}]
  %s3 = inlined_call_operand.hbm [shape: bf16[128,128], index: 3, kind: input, shape index: {}]
  %s4 = inlined_call_operand.vmem [shape: f32[1,128], index: 4, kind: input, shape index: {}]
  %s5 = inlined_call_operand.vmem [shape: bf16[128,128], index: 5, kind: input, shape index: {}]
  %s6 = inlined_call_operand.vmem [shape: f32[1,128], index: 6, kind: input, shape index: {}]
  %s7 = inlined_call_operand.vmem [shape: bf16[8,128], index: 7, kind: output, shape index: {}]
  %s8 = sld [smem:[#allocation0]]
  $region46: #{mlp_forward.1} parent=0
    _
  %s10 = ssub.s32 1, %s8
  %s11 = scalar_select 0, %s10, %s8
  $region1: #{mlp_forward.1} parent=0
    #allocation2 [shape = 'u8[16384]{0}', space=vmem, size = 0x4000, scoped, tag = 'input window, operand 1, single buffered']
    #allocation3 [shape = 's32[1]{0}', space=sflag, size = 0x4, scoped, tag = 'scoped memory for mlp_forward.1']
    #allocation4 [shape = 'u8[32768]{0}', space=vmem, size = 0x8000, scoped, tag = 'input window, operand 3, single buffered']
    #allocation5 [shape = 's32[1]{0}', space=sflag, size = 0x4, scoped, tag = 'scoped memory for mlp_forward.1']
    %12 = vsyncpa [#allocation3], 0
    %13 = vsyncpa [#allocation5], 0
    // Predicated region
    $region2: #{mlp_forward.1} parent=1 // pred_check
      _
    $region3: #{mlp_forward.1} parent=1 // pred_check_branch
      %15 = sbr.rel (0) target = $region5
    $region4: #{mlp_forward.1} parent=1 // pred_region
      _
    $region5: #{mlp_forward.1} parent=1 // pred_fallthru
      _
    // Predicated region
    $region6: #{mlp_forward.1} parent=1 // pred_check
      _
    $region7: #{mlp_forward.1} parent=1 // pred_check_branch
      %17 = sbr.rel (0) target = $region9
    $region8: #{mlp_forward.1} parent=1 // pred_region
      %s19 = ssub.s32 512, 512
      %20 = vsyncadd [#allocation3], %s19
      %s21 = sshll.u32 [#allocation2], 4
      %s22 = int_to_ptr.vmem [resolvable:$true] %s21
      %27 = dma.hbm_to_vmem [thread:$0]  %s1, 512, %s22, [#allocation3], 64, 64, 4
    $region9: #{mlp_forward.1} parent=1 // pred_fallthru
      _
    // Predicated region
    $region10: #{mlp_forward.1} parent=1 // pred_check
      _
    $region11: #{mlp_forward.1} parent=1 // pred_check_branch
      %29 = sbr.rel (0) target = $region13
    $region12: #{mlp_forward.1} parent=1 // pred_region
      _
    $region13: #{mlp_forward.1} parent=1 // pred_fallthru
      _
    // Predicated region
    $region14: #{mlp_forward.1} parent=1 // pred_check
      _
    $region15: #{mlp_forward.1} parent=1 // pred_check_branch
      %31 = sbr.rel (0) target = $region17
    $region16: #{mlp_forward.1} parent=1 // pred_region
      %s33 = ssub.s32 1024, 1024
      %34 = vsyncadd [#allocation5], %s33
      %s35 = sshll.u32 [#allocation4], 4
      %s36 = int_to_ptr.vmem [resolvable:$true] %s35
      %41 = dma.hbm_to_vmem [thread:$0]  %s3, 1024, %s36, [#allocation5], 64, 64, 4
    $region17: #{mlp_forward.1} parent=1 // pred_fallthru
      _
    // Predicated region
    $region18: #{mlp_forward.1} parent=1 // pred_check
      _
    $region19: #{mlp_forward.1} parent=1 // pred_check_branch
      %43 = sbr.rel (0) target = $region21
    $region20: #{mlp_forward.1} parent=1 // pred_region
      _
    $region21: #{mlp_forward.1} parent=1 // pred_fallthru
      _
    // Predicated region
    $region22: #{mlp_forward.1} parent=1 // pred_check
      _
    $region23: #{mlp_forward.1} parent=1 // pred_check_branch
      %45 = sbr.rel (0) target = $region25
    $region24: #{mlp_forward.1} parent=1 // pred_region
      _
    $region25: #{mlp_forward.1} parent=1 // pred_fallthru
      _
    // Predicated region
    $region26: #{mlp_forward.1} parent=1 // pred_check
      _
    $region27: #{mlp_forward.1} parent=1 // pred_check_branch
      %47 = sbr.rel (0) target = $region29
    $region28: #{mlp_forward.1} parent=1 // pred_region
      _
    $region29: #{mlp_forward.1} parent=1 // pred_fallthru
      _
    // Predicated region
    $region30: #{mlp_forward.1} parent=1 // pred_check
      _
    $region31: #{mlp_forward.1} parent=1 // pred_check_branch
      %49 = sbr.rel (0) target = $region33
    $region32: #{mlp_forward.1} parent=1 // pred_region
      %50 = dma.done [#allocation3], 512
    $region33: #{mlp_forward.1} parent=1 // pred_fallthru
      _
    // Predicated region
    $region34: #{mlp_forward.1} parent=1 // pred_check
      _
    $region35: #{mlp_forward.1} parent=1 // pred_check_branch
      %52 = sbr.rel (0) target = $region37
    $region36: #{mlp_forward.1} parent=1 // pred_region
      %53 = dma.done [#allocation5], 1024
    $region37: #{mlp_forward.1} parent=1 // pred_fallthru
      _
    %v55 = vld [vmem:[%s0] sm:$0xff]
    %v56 = vpack.c.bf16 %v55, %v55
    %v57 = vld [vmem:[#allocation2] sm:$0xf]
    %v58 = vld [vmem:[#allocation2 + $0x4] sm:$0xf]
    %v59 = vld [vmem:[#allocation2 + $0x8] sm:$0xf]
    %v60 = vld [vmem:[#allocation2 + $0xc] sm:$0xf]
    %v61 = vld [vmem:[#allocation2 + $0x10] sm:$0xf]
    %v62 = vld [vmem:[#allocation2 + $0x14] sm:$0xf]
    %v63 = vld [vmem:[#allocation2 + $0x18] sm:$0xf]
    %v64 = vld [vmem:[#allocation2 + $0x1c] sm:$0xf]
    %v65 = vld [vmem:[%s2] sm:$0x1]
    %v67 = vlaneseq
    %v68 = vshrl.u32 %v67, 7
    %v69 = vsub.s32 0, %v68
    %v70 = vrot.slane %v65, %v69
    %v80 = vunpack.c.l.b16 %v57
    %v81 = vunpack.c.l.b16 %v58
    %v82 = vunpack.c.l.b16 %v59
    %v83 = vunpack.c.l.b16 %v60
    %v84 = vunpack.c.l.b16 %v61
    %v85 = vunpack.c.l.b16 %v62
    %v86 = vunpack.c.l.b16 %v63
    %v87 = vunpack.c.l.b16 %v64
    %v88 = vpack.c.b16 %v81, %v80
    %v89 = vpack.c.b16 %v83, %v82
    %v90 = vpack.c.b16 %v85, %v84
    %v91 = vpack.c.b16 %v87, %v86
    %vm96 = vcmask 523264
    %v98 = vsel %vm96, %v56, 0
    %100 = vmatprep.subr.bf16.mxu0 0
    %101 = vmatpush1.bf16.msra.mxu0 %v88
    %102 = vmatprep.subr.bf16.mxu0 0
    %103 = vmatpush1.bf16.msra.mxu0 %v89
    %104 = vmatprep.subr.bf16.mxu0 0
    %105 = vmatpush1.bf16.msra.mxu0 %v90
    %106 = vmatprep.subr.bf16.mxu0 0
    %107 = vmatpush1.bf16.msra.mxu0 %v91
    %108 = vmatprep.subr.bf16.mxu0 0
    %109 = vmatpush1.bf16.msra.mxu0 0
    %110 = vmatprep.subr.bf16.mxu0 0
    %111 = vmatpush1.bf16.msra.mxu0 0
    %112 = vmatprep.subr.bf16.mxu0 0
    %113 = vmatpush1.bf16.msra.mxu0 0
    %114 = vmatprep.subr.bf16.mxu0 0
    %115 = vmatpush1.bf16.msra.mxu0 0
    %116 = vmatprep.subr.bf16.mxu0 0
    %117 = vmatpush1.bf16.msra.mxu0 0
    %118 = vmatprep.subr.bf16.mxu0 0
    %119 = vmatpush1.bf16.msra.mxu0 0
    %120 = vmatprep.subr.bf16.mxu0 0
    %121 = vmatpush1.bf16.msra.mxu0 0
    %122 = vmatprep.subr.bf16.mxu0 0
    %123 = vmatpush1.bf16.msra.mxu0 0
    %124 = vmatprep.subr.bf16.mxu0 0
    %125 = vmatpush1.bf16.msra.mxu0 0
    %126 = vmatprep.subr.bf16.mxu0 0
    %127 = vmatpush1.bf16.msra.mxu0 0
    %128 = vmatprep.subr.bf16.mxu0 0
    %129 = vmatpush1.bf16.msra.mxu0 0
    %130 = vmatprep.subr.bf16.mxu0 0
    %131 = vmatpush1.bf16.msra.mxu0 0
    %132 = vmatprep.mubr.bf16.mxu0 0
    %133 = vmatmul.mubr.bf16.gmra.mrb[0].mxu0 %v98
    %v134 = vpop.f32.mrb[0].mxu0
    %v135 = vadd.f32 %v70, %v134
    %v136 = vpop.f32.mrb[0].mxu0
    %v137 = vpop.f32.mrb[0].mxu0
    %v138 = vpop.f32.mrb[0].mxu0
    %139 = vdwg.mxu0
    %v140 = vmax.f32 %v135, 0.0
    %v141 = vpack.c.bf16 %v140, %v140
    %v142 = vld [vmem:[#allocation4] sm:$0xf]
    %v143 = vld [vmem:[#allocation4 + $0x4] sm:$0xf]
    %v144 = vld [vmem:[#allocation4 + $0x8] sm:$0xf]
    %v145 = vld [vmem:[#allocation4 + $0xc] sm:$0xf]
    %v146 = vld [vmem:[#allocation4 + $0x10] sm:$0xf]
    %v147 = vld [vmem:[#allocation4 + $0x14] sm:$0xf]
    %v148 = vld [vmem:[#allocation4 + $0x18] sm:$0xf]
    %v149 = vld [vmem:[#allocation4 + $0x1c] sm:$0xf]
    %v150 = vld [vmem:[#allocation4 + $0x20] sm:$0xf]
    %v151 = vld [vmem:[#allocation4 + $0x24] sm:$0xf]
    %v152 = vld [vmem:[#allocation4 + $0x28] sm:$0xf]
    %v153 = vld [vmem:[#allocation4 + $0x2c] sm:$0xf]
    %v154 = vld [vmem:[#allocation4 + $0x30] sm:$0xf]
    %v155 = vld [vmem:[#allocation4 + $0x34] sm:$0xf]
    %v156 = vld [vmem:[#allocation4 + $0x38] sm:$0xf]
    %v157 = vld [vmem:[#allocation4 + $0x3c] sm:$0xf]
    %v158 = vld [vmem:[%s4] sm:$0x1]
    %v160 = vlaneseq
    %v161 = vshrl.u32 %v160, 7
    %v162 = vsub.s32 0, %v161
    %v163 = vrot.slane %v158, %v162
    %v181 = vunpack.c.l.b16 %v142
    %v182 = vunpack.c.l.b16 %v143
    %v183 = vunpack.c.l.b16 %v144
    %v184 = vunpack.c.l.b16 %v145
    %v185 = vunpack.c.l.b16 %v146
    %v186 = vunpack.c.l.b16 %v147
    %v187 = vunpack.c.l.b16 %v148
    %v188 = vunpack.c.l.b16 %v149
    %v189 = vunpack.c.l.b16 %v150
    %v190 = vunpack.c.l.b16 %v151
    %v191 = vunpack.c.l.b16 %v152
    %v192 = vunpack.c.l.b16 %v153
    %v193 = vunpack.c.l.b16 %v154
    %v194 = vunpack.c.l.b16 %v155
    %v195 = vunpack.c.l.b16 %v156
    %v196 = vunpack.c.l.b16 %v157
    %v197 = vpack.c.b16 %v182, %v181
    %v198 = vpack.c.b16 %v184, %v183
    %v199 = vpack.c.b16 %v186, %v185
    %v200 = vpack.c.b16 %v188, %v187
    %v201 = vpack.c.b16 %v190, %v189
    %v202 = vpack.c.b16 %v192, %v191
    %v203 = vpack.c.b16 %v194, %v193
    %v204 = vpack.c.b16 %v196, %v195
    %213 = vmatprep.subr.bf16.mxu0 0
    %214 = vmatpush1.bf16.msra.mxu0 %v197
    %215 = vmatprep.subr.bf16.mxu0 0
    %216 = vmatpush1.bf16.msra.mxu0 %v198
    %217 = vmatprep.subr.bf16.mxu0 0
    %218 = vmatpush1.bf16.msra.mxu0 %v199
    %219 = vmatprep.subr.bf16.mxu0 0
    %220 = vmatpush1.bf16.msra.mxu0 %v200
    %221 = vmatprep.subr.bf16.mxu0 0
    %222 = vmatpush1.bf16.msra.mxu0 %v201
    %223 = vmatprep.subr.bf16.mxu0 0
    %224 = vmatpush1.bf16.msra.mxu0 %v202
    %225 = vmatprep.subr.bf16.mxu0 0
    %226 = vmatpush1.bf16.msra.mxu0 %v203
    %227 = vmatprep.subr.bf16.mxu0 0
    %228 = vmatpush1.bf16.msra.mxu0 %v204
    %229 = vmatprep.subr.bf16.mxu0 0
    %230 = vmatpush1.bf16.msra.mxu0 0
    %231 = vmatprep.subr.bf16.mxu0 0
    %232 = vmatpush1.bf16.msra.mxu0 0
    %233 = vmatprep.subr.bf16.mxu0 0
    %234 = vmatpush1.bf16.msra.mxu0 0
    %235 = vmatprep.subr.bf16.mxu0 0
    %236 = vmatpush1.bf16.msra.mxu0 0
    %237 = vmatprep.subr.bf16.mxu0 0
    %238 = vmatpush1.bf16.msra.mxu0 0
    %239 = vmatprep.subr.bf16.mxu0 0
    %240 = vmatpush1.bf16.msra.mxu0 0
    %241 = vmatprep.subr.bf16.mxu0 0
    %242 = vmatpush1.bf16.msra.mxu0 0
    %243 = vmatprep.subr.bf16.mxu0 0
    %244 = vmatpush1.bf16.msra.mxu0 0
    %245 = vmatprep.mubr.bf16.mxu0 0
    %246 = vmatmul.mubr.bf16.gmra.mrb[0].mxu0 %v141
    %v247 = vpop.f32.mrb[0].mxu0
    %v248 = vadd.f32 %v163, %v247
    %v249 = vpop.f32.mrb[0].mxu0
    %v250 = vpop.f32.mrb[0].mxu0
    %v251 = vpop.f32.mrb[0].mxu0
    %252 = vdwg.mxu0
    %v253 = vmax.f32 %v248, 0.0
    %v254 = vpack.c.bf16 %v253, %v253
    %v255 = vld [vmem:[%s5] sm:$0xf]
    %v256 = vld [vmem:[%s5 + $0x4] sm:$0xf]
    %v257 = vld [vmem:[%s5 + $0x8] sm:$0xf]
    %v258 = vld [vmem:[%s5 + $0xc] sm:$0xf]
    %v259 = vld [vmem:[%s5 + $0x10] sm:$0xf]
    %v260 = vld [vmem:[%s5 + $0x14] sm:$0xf]
    %v261 = vld [vmem:[%s5 + $0x18] sm:$0xf]
    %v262 = vld [vmem:[%s5 + $0x1c] sm:$0xf]
    %v263 = vld [vmem:[%s5 + $0x20] sm:$0xf]
    %v264 = vld [vmem:[%s5 + $0x24] sm:$0xf]
    %v265 = vld [vmem:[%s5 + $0x28] sm:$0xf]
    %v266 = vld [vmem:[%s5 + $0x2c] sm:$0xf]
    %v267 = vld [vmem:[%s5 + $0x30] sm:$0xf]
    %v268 = vld [vmem:[%s5 + $0x34] sm:$0xf]
    %v269 = vld [vmem:[%s5 + $0x38] sm:$0xf]
    %v270 = vld [vmem:[%s5 + $0x3c] sm:$0xf]
    %v271 = vld [vmem:[%s6] sm:$0x1]
    %v273 = vlaneseq
    %v274 = vshrl.u32 %v273, 7
    %v275 = vsub.s32 0, %v274
    %v276 = vrot.slane %v271, %v275
    %v294 = vunpack.c.l.b16 %v255
    %v295 = vunpack.c.l.b16 %v256
    %v296 = vunpack.c.l.b16 %v257
    %v297 = vunpack.c.l.b16 %v258
    %v298 = vunpack.c.l.b16 %v259
    %v299 = vunpack.c.l.b16 %v260
    %v300 = vunpack.c.l.b16 %v261
    %v301 = vunpack.c.l.b16 %v262
    %v302 = vunpack.c.l.b16 %v263
    %v303 = vunpack.c.l.b16 %v264
    %v304 = vunpack.c.l.b16 %v265
    %v305 = vunpack.c.l.b16 %v266
    %v306 = vunpack.c.l.b16 %v267
    %v307 = vunpack.c.l.b16 %v268
    %v308 = vunpack.c.l.b16 %v269
    %v309 = vunpack.c.l.b16 %v270
    %v310 = vpack.c.b16 %v295, %v294
    %v311 = vpack.c.b16 %v297, %v296
    %v312 = vpack.c.b16 %v299, %v298
    %v313 = vpack.c.b16 %v301, %v300
    %v314 = vpack.c.b16 %v303, %v302
    %v315 = vpack.c.b16 %v305, %v304
    %v316 = vpack.c.b16 %v307, %v306
    %v317 = vpack.c.b16 %v309, %v308
    %326 = vmatprep.subr.bf16.mxu0 0
    %327 = vmatpush1.bf16.msra.mxu0 %v310
    %328 = vmatprep.subr.bf16.mxu0 0
    %329 = vmatpush1.bf16.msra.mxu0 %v311
    %330 = vmatprep.subr.bf16.mxu0 0
    %331 = vmatpush1.bf16.msra.mxu0 %v312
    %332 = vmatprep.subr.bf16.mxu0 0
    %333 = vmatpush1.bf16.msra.mxu0 %v313
    %334 = vmatprep.subr.bf16.mxu0 0
    %335 = vmatpush1.bf16.msra.mxu0 %v314
    %336 = vmatprep.subr.bf16.mxu0 0
    %337 = vmatpush1.bf16.msra.mxu0 %v315
    %338 = vmatprep.subr.bf16.mxu0 0
    %339 = vmatpush1.bf16.msra.mxu0 %v316
    %340 = vmatprep.subr.bf16.mxu0 0
    %341 = vmatpush1.bf16.msra.mxu0 %v317
    %342 = vmatprep.subr.bf16.mxu0 0
    %343 = vmatpush1.bf16.msra.mxu0 0
    %344 = vmatprep.subr.bf16.mxu0 0
    %345 = vmatpush1.bf16.msra.mxu0 0
    %346 = vmatprep.subr.bf16.mxu0 0
    %347 = vmatpush1.bf16.msra.mxu0 0
    %348 = vmatprep.subr.bf16.mxu0 0
    %349 = vmatpush1.bf16.msra.mxu0 0
    %350 = vmatprep.subr.bf16.mxu0 0
    %351 = vmatpush1.bf16.msra.mxu0 0
    %352 = vmatprep.subr.bf16.mxu0 0
    %353 = vmatpush1.bf16.msra.mxu0 0
    %354 = vmatprep.subr.bf16.mxu0 0
    %355 = vmatpush1.bf16.msra.mxu0 0
    %356 = vmatprep.subr.bf16.mxu0 0
    %357 = vmatpush1.bf16.msra.mxu0 0
    %358 = vmatprep.mubr.bf16.mxu0 0
    %359 = vmatmul.mubr.bf16.gmra.mrb[0].mxu0 %v254
    %v360 = vpop.f32.mrb[0].mxu0
    %v361 = vadd.f32 %v276, %v360
    %v362 = vpop.f32.mrb[0].mxu0
    %v363 = vpop.f32.mrb[0].mxu0
    %v364 = vpop.f32.mrb[0].mxu0
    %365 = vdwg.mxu0
    %v366 = vpack.c.bf16 %v361, %v361
    %367 = vst [vmem:[%s7] sm:$0xf] %v366
    // Predicated region
    $region38: #{mlp_forward.1} parent=1 // pred_check
      _
    $region39: #{mlp_forward.1} parent=1 // pred_check_branch
      %369 = sbr.rel (0) target = $region41
    $region40: #{mlp_forward.1} parent=1 // pred_region
      _
    $region41: #{mlp_forward.1} parent=1 // pred_fallthru
      _
    // Predicated region
    $region42: #{mlp_forward.1} parent=1 // pred_check
      _
    $region43: #{mlp_forward.1} parent=1 // pred_check_branch
      %371 = sbr.rel (0) target = $region45
    $region44: #{mlp_forward.1} parent=1 // pred_region
      _
    $region45: #{mlp_forward.1} parent=1 // pred_fallthru
      _
    %372 = vsyncpa [#allocation3], 1
    %373 = vsyncpa [#allocation5], 1

</llo_original>
